<compile_context>
chip_gen: v7x
topology: tpu7x:2x2x1
jax: 0.10.0
libtpu: 0.0.40
codegen_flags: <defaults>
</compile_context>

<pallas_src>
import jax
import jax.numpy as jnp
from jax.experimental import pallas as pl
from jax.experimental.pallas import tpu as pltpu


# ----------------------------------------------------------------------------
# Pallas kernel 1: relative world-to-view transform (compact, VPU)
#
# Row-vector convention: M_all[n] = [[R_n, 0], [T_n, 1]],
# M_id_inv = [[R_q^T, 0], [-T_id @ R_q^T, 1]],  M_rel[n] = M_id_inv @ M_all[n]
#   => R_rel[n] = R_q^T @ R[n]
#      T_rel[n] = T[n] + (-T_id @ R_q^T) @ R[n]
#
# Layout: cam_ref/out_ref are (12, Npad); row 3*k + c holds R[n, k, c] across lanes n,
# row 9 + c holds T[n, c].  coef_ref is SMEM (12,): [0:9] = RqT[r, k] at 3*r + k,
# [9:12] = -T_id @ RqT.
# ----------------------------------------------------------------------------
def _relcam_kernel(coef_ref, cam_ref, out_ref):
    rrows = [cam_ref[pl.ds(j, 1), :] for j in range(9)]  # (1, Npad) each
    # R_rel[n, r, c] = sum_k RqT[r, k] * R[n, k, c]
    for r in range(3):
        for c in range(3):
            out_ref[pl.ds(3 * r + c, 1), :] = (
                coef_ref[3 * r + 0] * rrows[c + 0]
                + coef_ref[3 * r + 1] * rrows[c + 3]
                + coef_ref[3 * r + 2] * rrows[c + 6]
            )
    # T_rel[n, c] = T[n, c] + sum_k t'[k] * R[n, k, c]
    for c in range(3):
        out_ref[pl.ds(9 + c, 1), :] = (
            cam_ref[pl.ds(9 + c, 1), :]
            + coef_ref[9] * rrows[c + 0]
            + coef_ref[10] * rrows[c + 3]
            + coef_ref[11] * rrows[c + 6]
        )


def relative_camera_RT(R, T, R_q, T_id):
    """R: (N,3,3), T: (N,3), R_q: (3,3), T_id: (3,). Returns (R_rel, T_rel)."""
    N = R.shape[0]
    Npad = ((N + 127) // 128) * 128

    Rf = R.astype(jnp.float32)
    Tf = T.astype(jnp.float32)
    # cam_in[3*k + c, n] = R[n, k, c] ; cam_in[9 + c, n] = T[n, c]
    Rt = jnp.transpose(Rf, (1, 2, 0)).reshape(9, N)
    Tt = jnp.transpose(Tf, (1, 0))
    cam_in = jnp.concatenate([Rt, Tt], axis=0)  # (12, N)
    if Npad != N:
        cam_in = jnp.pad(cam_in, ((0, 0), (0, Npad - N)))

    RqT = R_q.astype(jnp.float32).T                      # (3,3)
    t_prime = -(T_id.astype(jnp.float32) @ RqT)          # (3,)
    coef = jnp.concatenate([RqT.reshape(9), t_prime], axis=0)  # (12,)

    out = pl.pallas_call(
        _relcam_kernel,
        out_shape=jax.ShapeDtypeStruct((12, Npad), jnp.float32),
        in_specs=[
            pl.BlockSpec(memory_space=pltpu.MemorySpace.SMEM),
            pl.BlockSpec(memory_space=pltpu.MemorySpace.VMEM),
        ],
        out_specs=pl.BlockSpec(memory_space=pltpu.MemorySpace.VMEM),
    )(coef, cam_in)

    R_rel = out[:9, :N].reshape(3, 3, N).transpose(2, 0, 1)   # (N,3,3)
    T_rel = out[9:12, :N].transpose(1, 0)                     # (N,3)
    return R_rel.astype(R.dtype), T_rel.astype(T.dtype)


# ----------------------------------------------------------------------------
# Pallas kernel 2: fused HBM row gather for image tensors
#   One pallas_call gathers K rows (query + context) of every provided image tensor.
#   Sources stay in HBM; BlockSpec index_map DMAs only the selected rows.
# ----------------------------------------------------------------------------
def gather_images_fused(tensors, idx):
    """tensors: list of (N, C, H, W) arrays (same N). idx: (K,) ints.
    Returns list of (K, C, H, W) arrays gathered along axis 0."""
    K = int(idx.shape[0])
    n_min = min(int(t.shape[0]) for t in tensors)
    idx = jnp.clip(idx.astype(jnp.int32), 0, n_min - 1)  # no silent OOB reads

    srcs, in_specs, out_specs, out_shapes, metas = [], [], [], [], []
    for t in tensors:
        N, C, H, W = t.shape
        D = C * H * W
        Dpad = ((D + 127) // 128) * 128      # lane-dense blocks / unmasked stores
        flat = t.reshape(N, D)
        if Dpad != D:
            flat = jnp.pad(flat, ((0, 0), (0, Dpad - D)))
        Rp = Dpad // 128
        srcs.append(flat.reshape(N, Rp, 128))
        in_specs.append(pl.BlockSpec((1, Rp, 128), lambda i, idx_ref: (idx_ref[i], 0, 0)))
        out_specs.append(pl.BlockSpec((1, Rp, 128), lambda i, idx_ref: (i, 0, 0)))
        out_shapes.append(jax.ShapeDtypeStruct((K, Rp, 128), t.dtype))
        metas.append((C, H, W, D))

    n = len(tensors)

    def kernel(idx_ref, *refs):   # refs = n inputs followed by n outputs
        for a in range(n):
            refs[n + a][...] = refs[a][...]

    outs = pl.pallas_call(
        kernel,
        out_shape=tuple(out_shapes),
        grid_spec=pltpu.PrefetchScalarGridSpec(
            num_scalar_prefetch=1,
            grid=(K,),
            in_specs=in_specs,
            out_specs=tuple(out_specs),
        ),
        compiler_params=pltpu.CompilerParams(dimension_semantics=("parallel",)),
    )(idx, *srcs)
    if not isinstance(outs, (list, tuple)):
        outs = (outs,)

    results = []
    for o, (C, H, W, D) in zip(outs, metas):
        results.append(o.reshape(K, -1)[:, :D].reshape(K, C, H, W))
    return results


# ----------------------------------------------------------------------------
# Module re-implementation
# ----------------------------------------------------------------------------
class RelativeCameraLoader:
    def __init__(self, query_batch_size=1, rand_query=True, relative=True,
                 center_at_origin=False):
        self.query_batch_size = query_batch_size
        self.rand_query = rand_query
        self.relative = relative
        self.center_at_origin = center_at_origin

    # TODO(synk): plot_cameras is a plotly visualization helper; no Pallas equivalent.

    @staticmethod
    def get_camera_slice(cams, indices):
        return {k: v[indices] for k, v in cams.items()}

    @staticmethod
    def concat_cameras(camera_list):
        return {k: jnp.concatenate([c[k] for c in camera_list], axis=0)
                for k in camera_list[0]}

    def get_relative_camera(self, cams, query_idx, center_at_origin=False):
        R, T = cams["R"], cams["T"]
        R_q = R[query_idx][0]                       # (3,3)
        T_q = T[query_idx][0]                       # (3,)
        T_id = T_q if center_at_origin else jnp.zeros((3,), jnp.float32)
        R_rel, T_rel = relative_camera_RT(R, T, R_q, T_id)   # Pallas kernel
        out = dict(cams)
        out["R"] = R_rel
        out["T"] = T_rel
        return out

    def __call__(self, scene_cameras, scene_rgb=None, scene_masks=None, query_idx=None,
                 context_size=3, context_idx=None, return_context=False, rng=None):
        N = scene_cameras["R"].shape[0]
        if rng is None:
            rng = jax.random.PRNGKey(0)
        k_q, k_c = jax.random.split(rng)

        if query_idx is None:
            query_idx = jnp.array([0], jnp.int32)
            if self.rand_query:
                query_idx = jax.random.permutation(k_q, N)[:1]
        else:
            query_idx = jnp.asarray(query_idx, jnp.int32).reshape(-1)
        if context_idx is None:
            context_idx = jax.random.permutation(k_c, N)[:context_size]
        else:
            context_idx = jnp.asarray(context_idx, jnp.int32).reshape(-1)

        if self.relative:
            rel_cameras = self.get_relative_camera(
                scene_cameras, query_idx, center_at_origin=self.center_at_origin)
        else:
            rel_cameras = scene_cameras

        query_cameras = self.get_camera_slice(rel_cameras, query_idx)
        context_cameras = self.get_camera_slice(rel_cameras, context_idx)

        # Single fused Pallas gather for query + context rows of rgb (and masks).
        query_rgb = query_masks = context_rgb = context_masks = None
        tensors = []
        if scene_rgb is not None:
            tensors.append(scene_rgb)
        if scene_masks is not None:
            tensors.append(scene_masks)
        if tensors:
            nq = int(query_idx.shape[0])
            all_idx = jnp.concatenate(
                [query_idx.astype(jnp.int32), context_idx.astype(jnp.int32)], axis=0)
            gathered = gather_images_fused(tensors, all_idx)
            pos = 0
            if scene_rgb is not None:
                g = gathered[pos]; pos += 1
                query_rgb, context_rgb = g[:nq], g[nq:]
            if scene_masks is not None:
                g = gathered[pos]; pos += 1
                query_masks, context_masks = g[:nq], g[nq:]

        if return_context:
            return (query_cameras, query_rgb, query_masks,
                    context_cameras, context_rgb, context_masks, context_idx)
        return (query_cameras, query_rgb, query_masks,
                context_cameras, context_rgb, context_masks)


# ----------------------------------------------------------------------------
# helpers / reference
# ----------------------------------------------------------------------------
def euler_to_rotmat(angles):
    ax, ay, az = angles[:, 0], angles[:, 1], angles[:, 2]
    cx, sx = jnp.cos(ax), jnp.sin(ax)
    cy, sy = jnp.cos(ay), jnp.sin(ay)
    cz, sz = jnp.cos(az), jnp.sin(az)
    o, z = jnp.ones_like(ax), jnp.zeros_like(ax)
    Rx = jnp.stack([o, z, z, z, cx, -sx, z, sx, cx], -1).reshape(-1, 3, 3)
    Ry = jnp.stack([cy, z, sy, z, o, z, -sy, z, cy], -1).reshape(-1, 3, 3)
    Rz = jnp.stack([cz, -sz, z, sz, cz, z, z, z, o], -1).reshape(-1, 3, 3)
    return jnp.einsum("nij,njk,nkl->nil", Rz, Ry, Rx)


def ref_relative(cams, query_idx, center_at_origin):
    R, T = cams["R"], cams["T"]
    N = R.shape[0]
    R_q, T_q = R[query_idx][0], T[query_idx][0]
    T_id = T_q if center_at_origin else jnp.zeros((3,), R.dtype)
    M_all = jnp.zeros((N, 4, 4), jnp.float32)
    M_all = M_all.at[:, :3, :3].set(R).at[:, 3, :3].set(T).at[:, 3, 3].set(1.0)
    RqT = R_q.T
    Minv = jnp.zeros((4, 4), jnp.float32)
    Minv = Minv.at[:3, :3].set(RqT).at[3, :3].set(-T_id @ RqT).at[3, 3].set(1.0)
    M_rel = jnp.einsum("rk,nkc->nrc", Minv, M_all)
    return M_rel[:, :3, :3], M_rel[:, 3, :3]


if __name__ == "__main__":
    key = jax.random.PRNGKey(0)
    ks = jax.random.split(key, 8)
    N, C, H, W, context_size = 8, 3, 16, 16, 3

    angles = jax.random.uniform(ks[0], (N, 3), minval=-3.14159, maxval=3.14159)
    R = euler_to_rotmat(angles).astype(jnp.float32)
    T = jax.random.normal(ks[1], (N, 3), dtype=jnp.float32)
    focal = jax.random.uniform(ks[2], (N, 2), minval=1.0, maxval=2.0)
    pp = jax.random.uniform(ks[3], (N, 2), minval=-0.1, maxval=0.1)
    image_size = jnp.tile(jnp.array([[H, W]], jnp.float32), (N, 1))
    scene_rgb = jax.random.uniform(ks[4], (N, C, H, W), dtype=jnp.float32)
    scene_masks = (jax.random.uniform(ks[5], (N, 1, H, W)) > 0.5).astype(jnp.float32)

    scene_cameras = dict(R=R, T=T, focal_length=focal, principal_point=pp,
                         image_size=image_size)

    # explicit query / context indices (deterministic) so we can check against a jnp reference
    query_idx = jax.random.permutation(ks[6], N)[:1]
    context_idx = jax.random.permutation(ks[7], N)[:context_size]

    loader = RelativeCameraLoader(rand_query=True, relative=True, center_at_origin=False)
    outs = loader(scene_cameras, scene_rgb, scene_masks,
                  query_idx=query_idx, context_idx=context_idx, return_context=True)
    jax.block_until_ready(jax.tree_util.tree_leaves(outs))

    (q_cams, q_rgb, q_masks, c_cams, c_rgb, c_masks, c_idx) = outs

    # correctness check vs pure-JAX reference
    R_rel_ref, T_rel_ref = ref_relative(scene_cameras, query_idx, center_at_origin=False)
    assert jnp.allclose(q_cams["R"], R_rel_ref[query_idx], atol=1e-5)
    assert jnp.allclose(q_cams["T"], T_rel_ref[query_idx], atol=1e-5)
    assert jnp.allclose(c_cams["R"], R_rel_ref[context_idx], atol=1e-5)
    assert jnp.allclose(c_cams["T"], T_rel_ref[context_idx], atol=1e-5)
    assert jnp.allclose(q_rgb, scene_rgb[query_idx])
    assert jnp.allclose(c_rgb, scene_rgb[context_idx])
    assert jnp.allclose(q_masks, scene_masks[query_idx])
    assert jnp.allclose(c_masks, scene_masks[context_idx])
    assert q_rgb.shape == (1, C, H, W) and c_rgb.shape == (context_size, C, H, W)
    assert q_masks.shape == (1, 1, H, W) and c_masks.shape == (context_size, 1, H, W)

    print("KERNEL_OK")
</pallas_src>

<mosaic_0001>
module attributes {stable_mosaic.version = 11 : i64} {
  func.func @_relcam_kernel(%arg0: memref<12xf32, #tpu.memory_space<smem>>, %arg1: memref<12x128xf32, #tpu.memory_space<vmem>>, %arg2: memref<12x128xf32, #tpu.memory_space<vmem>>) attributes {dimension_semantics = [], scalar_prefetch = 0 : i64, scratch_operands = 0 : i64, tpu.core_type = #tpu.core_type<tc>} {
    %c0 = arith.constant 0 : index
    %c0_0 = arith.constant 0 : index
    %0 = vector.load %arg1[%c0, %c0_0] : memref<12x128xf32, #tpu.memory_space<vmem>>, vector<1x128xf32>
    %c1 = arith.constant 1 : index
    %c0_1 = arith.constant 0 : index
    %1 = vector.load %arg1[%c1, %c0_1] : memref<12x128xf32, #tpu.memory_space<vmem>>, vector<1x128xf32>
    %c2 = arith.constant 2 : index
    %c0_2 = arith.constant 0 : index
    %2 = vector.load %arg1[%c2, %c0_2] : memref<12x128xf32, #tpu.memory_space<vmem>>, vector<1x128xf32>
    %c3 = arith.constant 3 : index
    %c0_3 = arith.constant 0 : index
    %3 = vector.load %arg1[%c3, %c0_3] : memref<12x128xf32, #tpu.memory_space<vmem>>, vector<1x128xf32>
    %c4 = arith.constant 4 : index
    %c0_4 = arith.constant 0 : index
    %4 = vector.load %arg1[%c4, %c0_4] : memref<12x128xf32, #tpu.memory_space<vmem>>, vector<1x128xf32>
    %c5 = arith.constant 5 : index
    %c0_5 = arith.constant 0 : index
    %5 = vector.load %arg1[%c5, %c0_5] : memref<12x128xf32, #tpu.memory_space<vmem>>, vector<1x128xf32>
    %c6 = arith.constant 6 : index
    %c0_6 = arith.constant 0 : index
    %6 = vector.load %arg1[%c6, %c0_6] : memref<12x128xf32, #tpu.memory_space<vmem>>, vector<1x128xf32>
    %c7 = arith.constant 7 : index
    %c0_7 = arith.constant 0 : index
    %7 = vector.load %arg1[%c7, %c0_7] : memref<12x128xf32, #tpu.memory_space<vmem>>, vector<1x128xf32>
    %c8 = arith.constant 8 : index
    %c0_8 = arith.constant 0 : index
    %8 = vector.load %arg1[%c8, %c0_8] : memref<12x128xf32, #tpu.memory_space<vmem>>, vector<1x128xf32>
    %c0_9 = arith.constant 0 : index
    %9 = memref.load %arg0[%c0_9] : memref<12xf32, #tpu.memory_space<smem>>
    %10 = vector.broadcast %9 : f32 to vector<1x128xf32>
    %11 = arith.mulf %10, %0 : vector<1x128xf32>
    %c1_10 = arith.constant 1 : index
    %12 = memref.load %arg0[%c1_10] : memref<12xf32, #tpu.memory_space<smem>>
    %13 = vector.broadcast %12 : f32 to vector<1x128xf32>
    %14 = arith.mulf %13, %3 : vector<1x128xf32>
    %15 = arith.addf %11, %14 : vector<1x128xf32>
    %c2_11 = arith.constant 2 : index
    %16 = memref.load %arg0[%c2_11] : memref<12xf32, #tpu.memory_space<smem>>
    %17 = vector.broadcast %16 : f32 to vector<1x128xf32>
    %18 = arith.mulf %17, %6 : vector<1x128xf32>
    %19 = arith.addf %15, %18 : vector<1x128xf32>
    %c0_12 = arith.constant 0 : index
    %c0_13 = arith.constant 0 : index
    %20 = vector.load %arg2[%c0_12, %c0_13] : memref<12x128xf32, #tpu.memory_space<vmem>>, vector<1x128xf32>
    tpu.vector_store %arg2[%c0_12, %c0_13], %19 {strides = array<i32>} : memref<12x128xf32, #tpu.memory_space<vmem>>, vector<1x128xf32>,
    %c0_14 = arith.constant 0 : index
    %21 = memref.load %arg0[%c0_14] : memref<12xf32, #tpu.memory_space<smem>>
    %22 = vector.broadcast %21 : f32 to vector<1x128xf32>
    %23 = arith.mulf %22, %1 : vector<1x128xf32>
    %c1_15 = arith.constant 1 : index
    %24 = memref.load %arg0[%c1_15] : memref<12xf32, #tpu.memory_space<smem>>
    %25 = vector.broadcast %24 : f32 to vector<1x128xf32>
    %26 = arith.mulf %25, %4 : vector<1x128xf32>
    %27 = arith.addf %23, %26 : vector<1x128xf32>
    %c2_16 = arith.constant 2 : index
    %28 = memref.load %arg0[%c2_16] : memref<12xf32, #tpu.memory_space<smem>>
    %29 = vector.broadcast %28 : f32 to vector<1x128xf32>
    %30 = arith.mulf %29, %7 : vector<1x128xf32>
    %31 = arith.addf %27, %30 : vector<1x128xf32>
    %c1_17 = arith.constant 1 : index
    %c0_18 = arith.constant 0 : index
    %32 = vector.load %arg2[%c1_17, %c0_18] : memref<12x128xf32, #tpu.memory_space<vmem>>, vector<1x128xf32>
    tpu.vector_store %arg2[%c1_17, %c0_18], %31 {strides = array<i32>} : memref<12x128xf32, #tpu.memory_space<vmem>>, vector<1x128xf32>,
    %c0_19 = arith.constant 0 : index
    %33 = memref.load %arg0[%c0_19] : memref<12xf32, #tpu.memory_space<smem>>
    %34 = vector.broadcast %33 : f32 to vector<1x128xf32>
    %35 = arith.mulf %34, %2 : vector<1x128xf32>
    %c1_20 = arith.constant 1 : index
    %36 = memref.load %arg0[%c1_20] : memref<12xf32, #tpu.memory_space<smem>>
    %37 = vector.broadcast %36 : f32 to vector<1x128xf32>
    %38 = arith.mulf %37, %5 : vector<1x128xf32>
    %39 = arith.addf %35, %38 : vector<1x128xf32>
    %c2_21 = arith.constant 2 : index
    %40 = memref.load %arg0[%c2_21] : memref<12xf32, #tpu.memory_space<smem>>
    %41 = vector.broadcast %40 : f32 to vector<1x128xf32>
    %42 = arith.mulf %41, %8 : vector<1x128xf32>
    %43 = arith.addf %39, %42 : vector<1x128xf32>
    %c2_22 = arith.constant 2 : index
    %c0_23 = arith.constant 0 : index
    %44 = vector.load %arg2[%c2_22, %c0_23] : memref<12x128xf32, #tpu.memory_space<vmem>>, vector<1x128xf32>
    tpu.vector_store %arg2[%c2_22, %c0_23], %43 {strides = array<i32>} : memref<12x128xf32, #tpu.memory_space<vmem>>, vector<1x128xf32>,
    %c3_24 = arith.constant 3 : index
    %45 = memref.load %arg0[%c3_24] : memref<12xf32, #tpu.memory_space<smem>>
    %46 = vector.broadcast %45 : f32 to vector<1x128xf32>
    %47 = arith.mulf %46, %0 : vector<1x128xf32>
    %c4_25 = arith.constant 4 : index
    %48 = memref.load %arg0[%c4_25] : memref<12xf32, #tpu.memory_space<smem>>
    %49 = vector.broadcast %48 : f32 to vector<1x128xf32>
    %50 = arith.mulf %49, %3 : vector<1x128xf32>
    %51 = arith.addf %47, %50 : vector<1x128xf32>
    %c5_26 = arith.constant 5 : index
    %52 = memref.load %arg0[%c5_26] : memref<12xf32, #tpu.memory_space<smem>>
    %53 = vector.broadcast %52 : f32 to vector<1x128xf32>
    %54 = arith.mulf %53, %6 : vector<1x128xf32>
    %55 = arith.addf %51, %54 : vector<1x128xf32>
    %c3_27 = arith.constant 3 : index
    %c0_28 = arith.constant 0 : index
    %56 = vector.load %arg2[%c3_27, %c0_28] : memref<12x128xf32, #tpu.memory_space<vmem>>, vector<1x128xf32>
    tpu.vector_store %arg2[%c3_27, %c0_28], %55 {strides = array<i32>} : memref<12x128xf32, #tpu.memory_space<vmem>>, vector<1x128xf32>,
    %c3_29 = arith.constant 3 : index
    %57 = memref.load %arg0[%c3_29] : memref<12xf32, #tpu.memory_space<smem>>
    %58 = vector.broadcast %57 : f32 to vector<1x128xf32>
    %59 = arith.mulf %58, %1 : vector<1x128xf32>
    %c4_30 = arith.constant 4 : index
    %60 = memref.load %arg0[%c4_30] : memref<12xf32, #tpu.memory_space<smem>>
    %61 = vector.broadcast %60 : f32 to vector<1x128xf32>
    %62 = arith.mulf %61, %4 : vector<1x128xf32>
    %63 = arith.addf %59, %62 : vector<1x128xf32>
    %c5_31 = arith.constant 5 : index
    %64 = memref.load %arg0[%c5_31] : memref<12xf32, #tpu.memory_space<smem>>
    %65 = vector.broadcast %64 : f32 to vector<1x128xf32>
    %66 = arith.mulf %65, %7 : vector<1x128xf32>
    %67 = arith.addf %63, %66 : vector<1x128xf32>
    %c4_32 = arith.constant 4 : index
    %c0_33 = arith.constant 0 : index
    %68 = vector.load %arg2[%c4_32, %c0_33] : memref<12x128xf32, #tpu.memory_space<vmem>>, vector<1x128xf32>
    tpu.vector_store %arg2[%c4_32, %c0_33], %67 {strides = array<i32>} : memref<12x128xf32, #tpu.memory_space<vmem>>, vector<1x128xf32>,
    %c3_34 = arith.constant 3 : index
    %69 = memref.load %arg0[%c3_34] : memref<12xf32, #tpu.memory_space<smem>>
    %70 = vector.broadcast %69 : f32 to vector<1x128xf32>
    %71 = arith.mulf %70, %2 : vector<1x128xf32>
    %c4_35 = arith.constant 4 : index
    %72 = memref.load %arg0[%c4_35] : memref<12xf32, #tpu.memory_space<smem>>
    %73 = vector.broadcast %72 : f32 to vector<1x128xf32>
    %74 = arith.mulf %73, %5 : vector<1x128xf32>
    %75 = arith.addf %71, %74 : vector<1x128xf32>
    %c5_36 = arith.constant 5 : index
    %76 = memref.load %arg0[%c5_36] : memref<12xf32, #tpu.memory_space<smem>>
    %77 = vector.broadcast %76 : f32 to vector<1x128xf32>
    %78 = arith.mulf %77, %8 : vector<1x128xf32>
    %79 = arith.addf %75, %78 : vector<1x128xf32>
    %c5_37 = arith.constant 5 : index
    %c0_38 = arith.constant 0 : index
    %80 = vector.load %arg2[%c5_37, %c0_38] : memref<12x128xf32, #tpu.memory_space<vmem>>, vector<1x128xf32>
    tpu.vector_store %arg2[%c5_37, %c0_38], %79 {strides = array<i32>} : memref<12x128xf32, #tpu.memory_space<vmem>>, vector<1x128xf32>,
    %c6_39 = arith.constant 6 : index
    %81 = memref.load %arg0[%c6_39] : memref<12xf32, #tpu.memory_space<smem>>
    %82 = vector.broadcast %81 : f32 to vector<1x128xf32>
    %83 = arith.mulf %82, %0 : vector<1x128xf32>
    %c7_40 = arith.constant 7 : index
    %84 = memref.load %arg0[%c7_40] : memref<12xf32, #tpu.memory_space<smem>>
    %85 = vector.broadcast %84 : f32 to vector<1x128xf32>
    %86 = arith.mulf %85, %3 : vector<1x128xf32>
    %87 = arith.addf %83, %86 : vector<1x128xf32>
    %c8_41 = arith.constant 8 : index
    %88 = memref.load %arg0[%c8_41] : memref<12xf32, #tpu.memory_space<smem>>
    %89 = vector.broadcast %88 : f32 to vector<1x128xf32>
    %90 = arith.mulf %89, %6 : vector<1x128xf32>
    %91 = arith.addf %87, %90 : vector<1x128xf32>
    %c6_42 = arith.constant 6 : index
    %c0_43 = arith.constant 0 : index
    %92 = vector.load %arg2[%c6_42, %c0_43] : memref<12x128xf32, #tpu.memory_space<vmem>>, vector<1x128xf32>
    tpu.vector_store %arg2[%c6_42, %c0_43], %91 {strides = array<i32>} : memref<12x128xf32, #tpu.memory_space<vmem>>, vector<1x128xf32>,
    %c6_44 = arith.constant 6 : index
    %93 = memref.load %arg0[%c6_44] : memref<12xf32, #tpu.memory_space<smem>>
    %94 = vector.broadcast %93 : f32 to vector<1x128xf32>
    %95 = arith.mulf %94, %1 : vector<1x128xf32>
    %c7_45 = arith.constant 7 : index
    %96 = memref.load %arg0[%c7_45] : memref<12xf32, #tpu.memory_space<smem>>
    %97 = vector.broadcast %96 : f32 to vector<1x128xf32>
    %98 = arith.mulf %97, %4 : vector<1x128xf32>
    %99 = arith.addf %95, %98 : vector<1x128xf32>
    %c8_46 = arith.constant 8 : index
    %100 = memref.load %arg0[%c8_46] : memref<12xf32, #tpu.memory_space<smem>>
    %101 = vector.broadcast %100 : f32 to vector<1x128xf32>
    %102 = arith.mulf %101, %7 : vector<1x128xf32>
    %103 = arith.addf %99, %102 : vector<1x128xf32>
    %c7_47 = arith.constant 7 : index
    %c0_48 = arith.constant 0 : index
    %104 = vector.load %arg2[%c7_47, %c0_48] : memref<12x128xf32, #tpu.memory_space<vmem>>, vector<1x128xf32>
    tpu.vector_store %arg2[%c7_47, %c0_48], %103 {strides = array<i32>} : memref<12x128xf32, #tpu.memory_space<vmem>>, vector<1x128xf32>,
    %c6_49 = arith.constant 6 : index
    %105 = memref.load %arg0[%c6_49] : memref<12xf32, #tpu.memory_space<smem>>
    %106 = vector.broadcast %105 : f32 to vector<1x128xf32>
    %107 = arith.mulf %106, %2 : vector<1x128xf32>
    %c7_50 = arith.constant 7 : index
    %108 = memref.load %arg0[%c7_50] : memref<12xf32, #tpu.memory_space<smem>>
    %109 = vector.broadcast %108 : f32 to vector<1x128xf32>
    %110 = arith.mulf %109, %5 : vector<1x128xf32>
    %111 = arith.addf %107, %110 : vector<1x128xf32>
    %c8_51 = arith.constant 8 : index
    %112 = memref.load %arg0[%c8_51] : memref<12xf32, #tpu.memory_space<smem>>
    %113 = vector.broadcast %112 : f32 to vector<1x128xf32>
    %114 = arith.mulf %113, %8 : vector<1x128xf32>
    %115 = arith.addf %111, %114 : vector<1x128xf32>
    %c8_52 = arith.constant 8 : index
    %c0_53 = arith.constant 0 : index
    %116 = vector.load %arg2[%c8_52, %c0_53] : memref<12x128xf32, #tpu.memory_space<vmem>>, vector<1x128xf32>
    tpu.vector_store %arg2[%c8_52, %c0_53], %115 {strides = array<i32>} : memref<12x128xf32, #tpu.memory_space<vmem>>, vector<1x128xf32>,
    %c9 = arith.constant 9 : index
    %c0_54 = arith.constant 0 : index
    %117 = vector.load %arg1[%c9, %c0_54] : memref<12x128xf32, #tpu.memory_space<vmem>>, vector<1x128xf32>
    %c9_55 = arith.constant 9 : index
    %118 = memref.load %arg0[%c9_55] : memref<12xf32, #tpu.memory_space<smem>>
    %119 = vector.broadcast %118 : f32 to vector<1x128xf32>
    %120 = arith.mulf %119, %0 : vector<1x128xf32>
    %121 = arith.addf %117, %120 : vector<1x128xf32>
    %c10 = arith.constant 10 : index
    %122 = memref.load %arg0[%c10] : memref<12xf32, #tpu.memory_space<smem>>
    %123 = vector.broadcast %122 : f32 to vector<1x128xf32>
    %124 = arith.mulf %123, %3 : vector<1x128xf32>
    %125 = arith.addf %121, %124 : vector<1x128xf32>
    %c11 = arith.constant 11 : index
    %126 = memref.load %arg0[%c11] : memref<12xf32, #tpu.memory_space<smem>>
    %127 = vector.broadcast %126 : f32 to vector<1x128xf32>
    %128 = arith.mulf %127, %6 : vector<1x128xf32>
    %129 = arith.addf %125, %128 : vector<1x128xf32>
    %c9_56 = arith.constant 9 : index
    %c0_57 = arith.constant 0 : index
    %130 = vector.load %arg2[%c9_56, %c0_57] : memref<12x128xf32, #tpu.memory_space<vmem>>, vector<1x128xf32>
    tpu.vector_store %arg2[%c9_56, %c0_57], %129 {strides = array<i32>} : memref<12x128xf32, #tpu.memory_space<vmem>>, vector<1x128xf32>,
    %c10_58 = arith.constant 10 : index
    %c0_59 = arith.constant 0 : index
    %131 = vector.load %arg1[%c10_58, %c0_59] : memref<12x128xf32, #tpu.memory_space<vmem>>, vector<1x128xf32>
    %c9_60 = arith.constant 9 : index
    %132 = memref.load %arg0[%c9_60] : memref<12xf32, #tpu.memory_space<smem>>
    %133 = vector.broadcast %132 : f32 to vector<1x128xf32>
    %134 = arith.mulf %133, %1 : vector<1x128xf32>
    %135 = arith.addf %131, %134 : vector<1x128xf32>
    %c10_61 = arith.constant 10 : index
    %136 = memref.load %arg0[%c10_61] : memref<12xf32, #tpu.memory_space<smem>>
    %137 = vector.broadcast %136 : f32 to vector<1x128xf32>
    %138 = arith.mulf %137, %4 : vector<1x128xf32>
    %139 = arith.addf %135, %138 : vector<1x128xf32>
    %c11_62 = arith.constant 11 : index
    %140 = memref.load %arg0[%c11_62] : memref<12xf32, #tpu.memory_space<smem>>
    %141 = vector.broadcast %140 : f32 to vector<1x128xf32>
    %142 = arith.mulf %141, %7 : vector<1x128xf32>
    %143 = arith.addf %139, %142 : vector<1x128xf32>
    %c10_63 = arith.constant 10 : index
    %c0_64 = arith.constant 0 : index
    %144 = vector.load %arg2[%c10_63, %c0_64] : memref<12x128xf32, #tpu.memory_space<vmem>>, vector<1x128xf32>
    tpu.vector_store %arg2[%c10_63, %c0_64], %143 {strides = array<i32>} : memref<12x128xf32, #tpu.memory_space<vmem>>, vector<1x128xf32>,
    %c11_65 = arith.constant 11 : index
    %c0_66 = arith.constant 0 : index
    %145 = vector.load %arg1[%c11_65, %c0_66] : memref<12x128xf32, #tpu.memory_space<vmem>>, vector<1x128xf32>
    %c9_67 = arith.constant 9 : index
    %146 = memref.load %arg0[%c9_67] : memref<12xf32, #tpu.memory_space<smem>>
    %147 = vector.broadcast %146 : f32 to vector<1x128xf32>
    %148 = arith.mulf %147, %2 : vector<1x128xf32>
    %149 = arith.addf %145, %148 : vector<1x128xf32>
    %c10_68 = arith.constant 10 : index
    %150 = memref.load %arg0[%c10_68] : memref<12xf32, #tpu.memory_space<smem>>
    %151 = vector.broadcast %150 : f32 to vector<1x128xf32>
    %152 = arith.mulf %151, %5 : vector<1x128xf32>
    %153 = arith.addf %149, %152 : vector<1x128xf32>
    %c11_69 = arith.constant 11 : index
    %154 = memref.load %arg0[%c11_69] : memref<12xf32, #tpu.memory_space<smem>>
    %155 = vector.broadcast %154 : f32 to vector<1x128xf32>
    %156 = arith.mulf %155, %8 : vector<1x128xf32>
    %157 = arith.addf %153, %156 : vector<1x128xf32>
    %c11_70 = arith.constant 11 : index
    %c0_71 = arith.constant 0 : index
    %158 = vector.load %arg2[%c11_70, %c0_71] : memref<12x128xf32, #tpu.memory_space<vmem>>, vector<1x128xf32>
    tpu.vector_store %arg2[%c11_70, %c0_71], %157 {strides = array<i32>} : memref<12x128xf32, #tpu.memory_space<vmem>>, vector<1x128xf32>,
    return
  }
}

</mosaic_0001>

<llo_original>
// kernel: tpu_custom_call.1
$region0: #{tpu_custom_call.1}
  #allocation0 [shape = 'u32[]', space=smem, size = 0x4, offset = 0x4, fixed_abs, tag = 'smem constant byte address 0x4 - core index']
  #allocation1 [shape = 'u32[144,128]{1,0:T(1,128)}', space=vmem, size = 0x12000, scoped, tag = 'internal scratch']
  %s0 = inlined_call_operand.hbm [shape: f32[12], index: 0, kind: input, shape index: {}]
  %s1 = inlined_call_operand.hbm [shape: f32[12,128], index: 1, kind: input, shape index: {}]
  %s2 = inlined_call_operand.hbm [shape: f32[12,128], index: 2, kind: output, shape index: {}]
  %s3 = sld [smem:[#allocation0]]
  $region26: #{tpu_custom_call.1} parent=0
    _
  %s5 = ssub.s32 1, %s3
  %s6 = scalar_select 0, %s5, %s3
  $region1: #{tpu_custom_call.1} parent=0
    #allocation2 [shape = 'u8[512]{0}', space=smem, size = 0x200, scoped, tag = 'input window, operand 0, single buffered']
    #allocation3 [shape = 's32[1]{0}', space=sflag, size = 0x4, scoped, tag = 'scoped memory for tpu_custom_call.1']
    #allocation4 [shape = 's32[1]{0}', space=sflag, size = 0x4, scoped, tag = 'scoped memory for tpu_custom_call.1']
    #allocation5 [shape = 's32[1]{0}', space=sflag, size = 0x4, scoped, tag = 'scoped memory for tpu_custom_call.1']
    #allocation6 [shape = 'u8[8192]{0}', space=vmem, size = 0x2000, scoped, tag = 'input window, operand 1, single buffered']
    #allocation7 [shape = 'u8[8192]{0}', space=vmem, size = 0x2000, scoped, tag = 'output window, operand 0, single buffered']
    %7 = vsyncpa [#allocation5], 0
    %8 = vsyncpa [#allocation3], 0
    %9 = vsyncpa [#allocation4], 0
    // Predicated region
    $region2: #{tpu_custom_call.1} parent=1 // pred_check
      _
    $region3: #{tpu_custom_call.1} parent=1 // pred_check_branch
      %11 = sbr.rel (0) target = $region5
    $region4: #{tpu_custom_call.1} parent=1 // pred_region
      %s13 = ssub.s32 16, 16
      %14 = vsyncadd [#allocation5], %s13
      %17 = dma.hbm_to_smem %s0, 16, [#allocation2], [#allocation5]
    $region5: #{tpu_custom_call.1} parent=1 // pred_fallthru
      _
    // Predicated region
    $region6: #{tpu_custom_call.1} parent=1 // pred_check
      _
    $region7: #{tpu_custom_call.1} parent=1 // pred_check_branch
      %19 = sbr.rel (0) target = $region9
    $region8: #{tpu_custom_call.1} parent=1 // pred_region
      %s21 = ssub.s32 256, 256
      %22 = vsyncadd [#allocation3], %s21
      %s23 = sshll.u32 [#allocation6], 4
      %s24 = int_to_ptr.vmem [resolvable:$true] %s23
      %29 = dma.hbm_to_vmem [thread:$0]  %s1, 256, %s24, [#allocation3], 128, 128, 8
    $region9: #{tpu_custom_call.1} parent=1 // pred_fallthru
      _
    // Predicated region
    $region10: #{tpu_custom_call.1} parent=1 // pred_check
      _
    $region11: #{tpu_custom_call.1} parent=1 // pred_check_branch
      %31 = sbr.rel (0) target = $region13
    $region12: #{tpu_custom_call.1} parent=1 // pred_region
      %32 = dma.done [#allocation5], 16
    $region13: #{tpu_custom_call.1} parent=1 // pred_fallthru
      _
    // Predicated region
    $region14: #{tpu_custom_call.1} parent=1 // pred_check
      _
    $region15: #{tpu_custom_call.1} parent=1 // pred_check_branch
      %34 = sbr.rel (0) target = $region17
    $region16: #{tpu_custom_call.1} parent=1 // pred_region
      %35 = dma.done [#allocation3], 256
    $region17: #{tpu_custom_call.1} parent=1 // pred_fallthru
      _
    %36 = sfence
    %v37 = vld [vmem:[#allocation6] sm:$0x1]
    %v38 = vld [vmem:[#allocation6 + $0x1] sm:$0x1]
    %v39 = vld [vmem:[#allocation6 + $0x2] sm:$0x1]
    %v40 = vld [vmem:[#allocation6 + $0x3] sm:$0x1]
    %v41 = vld [vmem:[#allocation6 + $0x4] sm:$0x1]
    %v42 = vld [vmem:[#allocation6 + $0x5] sm:$0x1]
    %v43 = vld [vmem:[#allocation6 + $0x6] sm:$0x1]
    %v44 = vld [vmem:[#allocation6 + $0x7] sm:$0x1]
    %v45 = vld [vmem:[#allocation6 + $0x8] sm:$0x1]
    %s46 = sld [smem:[#allocation2]]
    %v47 = vstv %s46
    %v48 = vmul.f32 %v47, %v37
    %s49 = sld [smem:[#allocation2 + $0x1]]
    %v50 = vstv %s49
    %v51 = vmul.f32 %v50, %v40
    %v52 = vadd.f32 %v48, %v51
    %s53 = sld [smem:[#allocation2 + $0x2]]
    %v54 = vstv %s53
    %v55 = vmul.f32 %v54, %v43
    %v56 = vadd.f32 %v52, %v55
    %57 = vst [vmem:[#allocation7] sm:$0x1] %v56
    %s58 = sld [smem:[#allocation2]]
    %v59 = vstv %s58
    %v60 = vmul.f32 %v59, %v38
    %s61 = sld [smem:[#allocation2 + $0x1]]
    %v62 = vstv %s61
    %v63 = vmul.f32 %v62, %v41
    %v64 = vadd.f32 %v60, %v63
    %s65 = sld [smem:[#allocation2 + $0x2]]
    %v66 = vstv %s65
    %v67 = vmul.f32 %v66, %v44
    %v68 = vadd.f32 %v64, %v67
    %69 = vst [vmem:[#allocation7 + $0x1] sm:$0x1] %v68
    %s70 = sld [smem:[#allocation2]]
    %v71 = vstv %s70
    %v72 = vmul.f32 %v71, %v39
    %s73 = sld [smem:[#allocation2 + $0x1]]
    %v74 = vstv %s73
    %v75 = vmul.f32 %v74, %v42
    %v76 = vadd.f32 %v72, %v75
    %s77 = sld [smem:[#allocation2 + $0x2]]
    %v78 = vstv %s77
    %v79 = vmul.f32 %v78, %v45
    %v80 = vadd.f32 %v76, %v79
    %81 = vst [vmem:[#allocation7 + $0x2] sm:$0x1] %v80
    %s82 = sld [smem:[#allocation2 + $0x3]]
    %v83 = vstv %s82
    %v84 = vmul.f32 %v83, %v37
    %s85 = sld [smem:[#allocation2 + $0x4]]
    %v86 = vstv %s85
    %v87 = vmul.f32 %v86, %v40
    %v88 = vadd.f32 %v84, %v87
    %s89 = sld [smem:[#allocation2 + $0x5]]
    %v90 = vstv %s89
    %v91 = vmul.f32 %v90, %v43
    %v92 = vadd.f32 %v88, %v91
    %93 = vst [vmem:[#allocation7 + $0x3] sm:$0x1] %v92
    %s94 = sld [smem:[#allocation2 + $0x3]]
    %v95 = vstv %s94
    %v96 = vmul.f32 %v95, %v38
    %s97 = sld [smem:[#allocation2 + $0x4]]
    %v98 = vstv %s97
    %v99 = vmul.f32 %v98, %v41
    %v100 = vadd.f32 %v96, %v99
    %s101 = sld [smem:[#allocation2 + $0x5]]
    %v102 = vstv %s101
    %v103 = vmul.f32 %v102, %v44
    %v104 = vadd.f32 %v100, %v103
    %105 = vst [vmem:[#allocation7 + $0x4] sm:$0x1] %v104
    %s106 = sld [smem:[#allocation2 + $0x3]]
    %v107 = vstv %s106
    %v108 = vmul.f32 %v107, %v39
    %s109 = sld [smem:[#allocation2 + $0x4]]
    %v110 = vstv %s109
    %v111 = vmul.f32 %v110, %v42
    %v112 = vadd.f32 %v108, %v111
    %s113 = sld [smem:[#allocation2 + $0x5]]
    %v114 = vstv %s113
    %v115 = vmul.f32 %v114, %v45
    %v116 = vadd.f32 %v112, %v115
    %117 = vst [vmem:[#allocation7 + $0x5] sm:$0x1] %v116
    %s118 = sld [smem:[#allocation2 + $0x6]]
    %v119 = vstv %s118
    %v120 = vmul.f32 %v119, %v37
    %s121 = sld [smem:[#allocation2 + $0x7]]
    %v122 = vstv %s121
    %v123 = vmul.f32 %v122, %v40
    %v124 = vadd.f32 %v120, %v123
    %s125 = sld [smem:[#allocation2 + $0x8]]
    %v126 = vstv %s125
    %v127 = vmul.f32 %v126, %v43
    %v128 = vadd.f32 %v124, %v127
    %129 = vst [vmem:[#allocation7 + $0x6] sm:$0x1] %v128
    %s130 = sld [smem:[#allocation2 + $0x6]]
    %v131 = vstv %s130
    %v132 = vmul.f32 %v131, %v38
    %s133 = sld [smem:[#allocation2 + $0x7]]
    %v134 = vstv %s133
    %v135 = vmul.f32 %v134, %v41
    %v136 = vadd.f32 %v132, %v135
    %s137 = sld [smem:[#allocation2 + $0x8]]
    %v138 = vstv %s137
    %v139 = vmul.f32 %v138, %v44
    %v140 = vadd.f32 %v136, %v139
    %141 = vst [vmem:[#allocation7 + $0x7] sm:$0x1] %v140
    %s142 = sld [smem:[#allocation2 + $0x6]]
    %v143 = vstv %s142
    %v144 = vmul.f32 %v143, %v39
    %s145 = sld [smem:[#allocation2 + $0x7]]
    %v146 = vstv %s145
    %v147 = vmul.f32 %v146, %v42
    %v148 = vadd.f32 %v144, %v147
    %s149 = sld [smem:[#allocation2 + $0x8]]
    %v150 = vstv %s149
    %v151 = vmul.f32 %v150, %v45
    %v152 = vadd.f32 %v148, %v151
    %153 = vst [vmem:[#allocation7 + $0x8] sm:$0x1] %v152
    %v154 = vld [vmem:[#allocation6 + $0x9] sm:$0x1]
    %s155 = sld [smem:[#allocation2 + $0x9]]
    %v156 = vstv %s155
    %v157 = vmul.f32 %v156, %v37
    %v158 = vadd.f32 %v154, %v157
    %s159 = sld [smem:[#allocation2 + $0xa]]
    %v160 = vstv %s159
    %v161 = vmul.f32 %v160, %v40
    %v162 = vadd.f32 %v158, %v161
    %s163 = sld [smem:[#allocation2 + $0xb]]
    %v164 = vstv %s163
    %v165 = vmul.f32 %v164, %v43
    %v166 = vadd.f32 %v162, %v165
    %167 = vst [vmem:[#allocation7 + $0x9] sm:$0x1] %v166
    %v168 = vld [vmem:[#allocation6 + $0xa] sm:$0x1]
    %s169 = sld [smem:[#allocation2 + $0x9]]
    %v170 = vstv %s169
    %v171 = vmul.f32 %v170, %v38
    %v172 = vadd.f32 %v168, %v171
    %s173 = sld [smem:[#allocation2 + $0xa]]
    %v174 = vstv %s173
    %v175 = vmul.f32 %v174, %v41
    %v176 = vadd.f32 %v172, %v175
    %s177 = sld [smem:[#allocation2 + $0xb]]
    %v178 = vstv %s177
    %v179 = vmul.f32 %v178, %v44
    %v180 = vadd.f32 %v176, %v179
    %181 = vst [vmem:[#allocation7 + $0xa] sm:$0x1] %v180
    %v182 = vld [vmem:[#allocation6 + $0xb] sm:$0x1]
    %s183 = sld [smem:[#allocation2 + $0x9]]
    %v184 = vstv %s183
    %v185 = vmul.f32 %v184, %v39
    %v186 = vadd.f32 %v182, %v185
    %s187 = sld [smem:[#allocation2 + $0xa]]
    %v188 = vstv %s187
    %v189 = vmul.f32 %v188, %v42
    %v190 = vadd.f32 %v186, %v189
    %s191 = sld [smem:[#allocation2 + $0xb]]
    %v192 = vstv %s191
    %v193 = vmul.f32 %v192, %v45
    %v194 = vadd.f32 %v190, %v193
    %195 = vst [vmem:[#allocation7 + $0xb] sm:$0x1] %v194
    // Predicated region
    $region18: #{tpu_custom_call.1} parent=1 // pred_check
      _
    $region19: #{tpu_custom_call.1} parent=1 // pred_check_branch
      %197 = sbr.rel (0) target = $region21
    $region20: #{tpu_custom_call.1} parent=1 // pred_region
      %s199 = ssub.s32 256, 256
      %200 = vsyncadd [#allocation4], %s199
      %s201 = sshll.u32 [#allocation7], 4
      %s202 = int_to_ptr.vmem [resolvable:$true] %s201
      %207 = dma.vmem_to_hbm [thread:$0]  %s202, 256, %s2, [#allocation4], 128, 128, 8
    $region21: #{tpu_custom_call.1} parent=1 // pred_fallthru
      _
    // Predicated region
    $region22: #{tpu_custom_call.1} parent=1 // pred_check
      _
    $region23: #{tpu_custom_call.1} parent=1 // pred_check_branch
      %209 = sbr.rel (0) target = $region25
    $region24: #{tpu_custom_call.1} parent=1 // pred_region
      %210 = dma.done [#allocation4], 256
    $region25: #{tpu_custom_call.1} parent=1 // pred_fallthru
      _
    %211 = vsyncpa [#allocation3], 1
    %212 = vsyncpa [#allocation4], 1
    %213 = vsyncpa [#allocation5], 1

</llo_original>
